<compile_context>
chip_gen: v5e
topology: v5e:2x2
jax: 0.10.0
libtpu: 0.0.40
codegen_flags: <defaults>
</compile_context>

<pallas_src>
import jax
import jax.numpy as jnp
from jax.experimental import pallas as pl
from jax.experimental.pallas import tpu as pltpu


def _fa_conv_kernel(x_ref, w_ref, b_ref, o_ref):
    # x_ref: (1, K, TP)   input slice for batch b, lane tile pt (streamed)
    # w_ref: (TO, K, TP)  weight slice for oc-tile ot, lane tile pt (resident over b)
    # b_ref: (TO, TP)     bias slice (resident over b)
    # o_ref: (1, TO, TP)  output slice (sublane-dense over TO, lane-dense over TP)
    x = x_ref[...]                              # (1, K, TP)
    prod = w_ref[...] * x                       # (TO, K, TP) elementwise (VPU), bcast over TO
    red = jnp.sum(prod, axis=1)                 # (TO, TP)    sublane-axis reduce (XLU)
    o_ref[0, :, :] = red + b_ref[...]           # full-vreg, unmasked store


def _largest_tile(full, unit, cap):
    """Largest multiple of `unit` that divides `full` and is <= cap; else `full`."""
    if full % unit != 0:
        return full                              # full extent (allowed by BlockSpec)
    t = min(full, max(unit, (cap // unit) * unit))
    while full % t != 0:
        t -= unit
    return t


def _choose_tiles(OC, K, P, budget_bytes=12 << 20):
    """Pick (TO, TP) so one single-buffered step stays within `budget_bytes` (f32).

    Double-buffering roughly doubles this, keeping us under ~24 MiB -> safe for
    v7x's 32 MiB scoped / 64 MiB physical VMEM as well as v5e/v6e.
    """
    tp = _largest_tile(P, 128, 2048)
    to = OC

    def step_bytes(to_, tp_):
        # x(1,K,TP) + weight(TO,K,TP) + bias(TO,TP) + out(1,TO,TP), f32
        return 4 * tp_ * (K + to_ * K + 2 * to_)

    while step_bytes(to, tp) > budget_bytes:
        # Shrink the out-channel tile first (keep it a multiple of 8 dividing OC).
        if OC % 8 == 0 and to > 8:
            nt = to - 8
            while nt > 8 and OC % nt != 0:
                nt -= 8
            to = nt
            continue
        # Then shrink the lane tile (keep it a multiple of 128 dividing P).
        if P % 128 == 0 and tp > 128:
            nt = tp - 128
            while nt > 128 and P % nt != 0:
                nt -= 128
            if nt < tp:
                tp = nt
                continue
        break
    return to, tp


def fa_conv2d_forward(x, weight, bias, image_size):
    """x: (B, K, P) f32, weight: (OC, K, P) f32, bias: (OC, P) f32.
    Returns (B, OC, image_size, image_size) f32 (NCHW)."""
    B, K, P = x.shape
    OC = weight.shape[0]
    assert weight.shape == (OC, K, P)
    assert bias.shape == (OC, P)
    assert P == image_size * image_size

    TO, TP = _choose_tiles(OC, K, P)

    # Batch innermost => weight/bias block indices are invariant over the inner
    # axis, so each weight/bias tile is DMA'd once per (ot, pt) and reused
    # across all B steps; the input is streamed (changes every step).
    grid = (OC // TO, P // TP, B)

    out = pl.pallas_call(
        _fa_conv_kernel,
        out_shape=jax.ShapeDtypeStruct((B, OC, P), x.dtype),
        grid_spec=pltpu.PrefetchScalarGridSpec(
            num_scalar_prefetch=0,
            grid=grid,
            in_specs=[
                pl.BlockSpec((1, K, TP), lambda ot, pt, b: (b, 0, pt)),    # input (streamed)
                pl.BlockSpec((TO, K, TP), lambda ot, pt, b: (ot, 0, pt)),  # weight (resident over b)
                pl.BlockSpec((TO, TP), lambda ot, pt, b: (ot, pt)),        # bias (resident over b)
            ],
            out_specs=pl.BlockSpec((1, TO, TP), lambda ot, pt, b: (b, ot, pt)),
        ),
        compiler_params=pltpu.CompilerParams(
            dimension_semantics=("parallel", "parallel", "parallel"),
            vmem_limit_bytes=32 * 1024 * 1024,
        ),
    )(x, weight, bias)

    # All NCHW reshaping stays in the wrapper (no in-kernel layout plumbing).
    return out.reshape(B, OC, image_size, image_size)


if __name__ == "__main__":
    # Module hyper-parameters (small, consistent with FA_Conv2d.__init__)
    in_channels = 4
    out_channels = 8
    kernel_size = 3
    image_size = 16
    K = kernel_size ** 2 * in_channels       # 36
    P = image_size ** 2                      # 256
    B = 2

    key = jax.random.PRNGKey(0)
    k_x, k_w = jax.random.split(key, 2)

    # Deterministic parameter init mirroring torch.nn.init:
    #   weight ~ U(-1/kernel_size, 1/kernel_size), bias = 0
    # weight_fa is only used in backward (feedback alignment), not needed here.
    weight = jax.random.uniform(
        k_w, (out_channels, K, P), dtype=jnp.float32,
        minval=-1.0 / kernel_size, maxval=1.0 / kernel_size)
    bias = jnp.zeros((out_channels, P), dtype=jnp.float32)

    # Example (unfolded / im2col) input: (B, K, P)
    x = jax.random.normal(k_x, (B, K, P), dtype=jnp.float32)

    out = fa_conv2d_forward(x, weight, bias, image_size)
    out = jax.block_until_ready(out)

    # Reference check in plain JAX
    ref = (jnp.einsum("okp,bkp->bop", weight, x) + bias[None]).reshape(
        B, out_channels, image_size, image_size)
    assert out.shape == (B, out_channels, image_size, image_size)
    assert jnp.allclose(out, ref, atol=1e-5, rtol=1e-5)

    print("KERNEL_OK")
</pallas_src>

<mosaic_0001>
module attributes {stable_mosaic.version = 11 : i64} {
  func.func @_fa_conv_kernel(%arg0: i32, %arg1: i32, %arg2: i32, %arg3: memref<1x36x256xf32, #tpu.memory_space<vmem>>, %arg4: memref<8x36x256xf32, #tpu.memory_space<vmem>>, %arg5: memref<8x256xf32, #tpu.memory_space<vmem>>, %arg6: memref<1x8x256xf32, #tpu.memory_space<vmem>>) attributes {dimension_semantics = [#tpu.dimension_semantics<parallel>, #tpu.dimension_semantics<parallel>, #tpu.dimension_semantics<parallel>], iteration_bounds = array<i64: 1, 1, 2>, scalar_prefetch = 0 : i64, scratch_operands = 0 : i64, tpu.core_type = #tpu.core_type<tc>, window_params = [{transform_indices = @transform_0, window_bounds = array<i64: 1, 36, 256>}, {transform_indices = @transform_1, window_bounds = array<i64: 8, 36, 256>}, {transform_indices = @transform_2, window_bounds = array<i64: 8, 256>}, {transform_indices = @transform_3, window_bounds = array<i64: 1, 8, 256>}]} {
    %c0 = arith.constant 0 : index
    %c0_0 = arith.constant 0 : index
    %c0_1 = arith.constant 0 : index
    %0 = vector.load %arg3[%c0, %c0_0, %c0_1] : memref<1x36x256xf32, #tpu.memory_space<vmem>>, vector<1x36x256xf32>
    %c0_2 = arith.constant 0 : index
    %c0_3 = arith.constant 0 : index
    %c0_4 = arith.constant 0 : index
    %1 = vector.load %arg4[%c0_2, %c0_3, %c0_4] : memref<8x36x256xf32, #tpu.memory_space<vmem>>, vector<8x36x256xf32>
    %2 = vector.broadcast %0 : vector<1x36x256xf32> to vector<8x36x256xf32>
    %3 = arith.mulf %1, %2 : vector<8x36x256xf32>
    %cst = arith.constant dense<0.000000e+00> : vector<8x256xf32>
    %4 = vector.multi_reduction <add>, %3, %cst [1] : vector<8x36x256xf32> to vector<8x256xf32>
    %c0_5 = arith.constant 0 : index
    %c0_6 = arith.constant 0 : index
    %5 = vector.load %arg5[%c0_5, %c0_6] : memref<8x256xf32, #tpu.memory_space<vmem>>, vector<8x256xf32>
    %6 = arith.addf %4, %5 : vector<8x256xf32>
    %c0_7 = arith.constant 0 : index
    %c0_8 = arith.constant 0 : index
    %c0_9 = arith.constant 0 : index
    %7 = vector.load %arg6[%c0_7, %c0_8, %c0_9] : memref<1x8x256xf32, #tpu.memory_space<vmem>>, vector<1x8x256xf32>
    %8 = vector.shape_cast %7 : vector<1x8x256xf32> to vector<8x256xf32>
    %9 = vector.shape_cast %6 : vector<8x256xf32> to vector<1x8x256xf32>
    tpu.vector_store %arg6[%c0_7, %c0_8, %c0_9], %9 {strides = array<i32>} : memref<1x8x256xf32, #tpu.memory_space<vmem>>, vector<1x8x256xf32>,
    return
  }
  func.func @transform_0(%arg0: i32, %arg1: i32, %arg2: i32) -> (i32, i32, i32) {
    %c0_i32 = arith.constant 0 : i32
    %c0_i32_0 = arith.constant 0 : i32
    return %arg2, %c0_i32, %arg1 : i32, i32, i32
  }
  func.func @transform_1(%arg0: i32, %arg1: i32, %arg2: i32) -> (i32, i32, i32) {
    %c0_i32 = arith.constant 0 : i32
    %c0_i32_0 = arith.constant 0 : i32
    return %arg0, %c0_i32, %arg1 : i32, i32, i32
  }
  func.func @transform_2(%arg0: i32, %arg1: i32, %arg2: i32) -> (i32, i32) {
    %c0_i32 = arith.constant 0 : i32
    return %arg0, %arg1 : i32, i32
  }
  func.func @transform_3(%arg0: i32, %arg1: i32, %arg2: i32) -> (i32, i32, i32) {
    %c0_i32 = arith.constant 0 : i32
    return %arg2, %arg0, %arg1 : i32, i32, i32
  }
}

</mosaic_0001>

<llo_original>
// kernel: tpu_custom_call.1
$region0: #{tpu_custom_call.1}
  #allocation0 [shape = 'u32[]', space=smem, size = 0x4, offset = 0x4, fixed_abs, tag = 'smem constant byte address 0x4 - core index']
  #allocation1 [shape = 'u32[72,128]{1,0:T(1,128)}', space=vmem, size = 0x9000, scoped, tag = 'internal scratch']
  %s0 = inlined_call_operand.vmem [shape: f32[2,36,256], index: 0, kind: input, shape index: {}]
  %s1 = inlined_call_operand.vmem [shape: f32[8,36,256], index: 1, kind: input, shape index: {}]
  %s2 = inlined_call_operand.vmem [shape: f32[8,256], index: 2, kind: input, shape index: {}]
  %s3 = inlined_call_operand.hbm [shape: f32[2,8,256], index: 3, kind: output, shape index: {}]
  %s4 = sld [smem:[#allocation0]]
  $region45: #{tpu_custom_call.1} parent=0
    _
  %s6 = ssub.s32 1, %s4
  %s7 = scalar_select 0, %s6, %s4
  $region1: #{tpu_custom_call.1} parent=0
    #allocation2 [shape = 'u8[16384]{0}', space=vmem, size = 0x4000, scoped, tag = 'output window, operand 0']
    #allocation3 [shape = 's32[2]{0}', space=sflag, size = 0x8, scoped, tag = 'scoped memory for tpu_custom_call.1']
    %8 = vsyncpa [#allocation3], 0
    %s9 = scalar_lea.sflag [#allocation3], 1
    %10 = vsyncpa %s9, 0
    loop: start=0, step=1, limit=4
    $region2: #{tpu_custom_call.1} parent=1 // loop_pre_header
      _
    $region3: #{tpu_custom_call.1} parent=1 // loop_header
      %s12 = sphi 0, %s16
      %p13 = scmp.ge.s32.totalorder %s12, 4
      %s19 = sphi 0, %s38
      %s20 = sphi 0, %s34
      %s21 = sphi 0, %s30
      %s22 = sphi 0, %s19
      %s23 = sphi 0, %s20
      %s24 = sphi 0, %s21
      %s25 = sphi 0, %s22
      %s26 = sphi 0, %s23
      %s27 = sphi 0, %s24
      %s43 = sphi 0, %s45
      %s46 = sphi 0, %s43
      %s47 = sphi 0, %s46
      %s63 = sphi 0, %s47
      %s71 = sphi 0, %s73
      %s74 = sphi 0, %s71
      %s75 = sphi 0, %s74
      %s91 = sphi 0, %s75
      %s99 = sphi 0, %s101
      %s102 = sphi 0, %s99
      %s103 = sphi 0, %s102
      %s119 = sphi 0, %s103
      %s129 = sphi 0, %s131
      %s132 = sphi 0, %s129
      %s133 = sphi 0, %s132
      %s149 = sphi 0, %s133
    $region4: #{tpu_custom_call.1} parent=1 // loop_header_branch
      %15 = sbr.rel (%p13) target = $region8
    $region5: #{tpu_custom_call.1} parent=1 // loop_body
      %s17 = ssub.s32 %s12, 1
      %s18 = ssub.s32 %s12, 2
      %s28 = sadd.s32 1, %s21
      %p29 = scmp.ge.s32.totalorder %s28, 2
      %s30 = scalar_select %p29, 0, %s28
      %s31 = sadd.s32 1, %s20
      %s32 = scalar_select %p29, %s31, %s20
      %p33 = scmp.ge.s32.totalorder %s32, 1
      %s34 = scalar_select %p33, 0, %s32
      %s35 = sadd.s32 1, %s19
      %s36 = scalar_select %p33, %s35, %s19
      %p37 = scmp.ge.s32.totalorder %s36, 1
      %s38 = scalar_select %p37, 0, %s36
      %s39 = ssub.s32 %s21, %s30
      %s40 = ssub.s32 %s20, %s34
      %s41 = sor.u32 %s39, %s40
      %p42 = scmp.eq.s32.totalorder %s41, 0
      %s44 = sadd.s32 %s43, 1
      %s45 = scalar_select %p42, %s43, %s44
      %p48 = pneg %p42
      %p49 = scmp.eq.s32.totalorder %s12, 1
      %p50 = por %p48, %p49
      %p51 = scmp.ne.s32.totalorder %s43, %s46
      %p52 = scmp.eq.s32.totalorder %s12, 0
      %p53 = por %p51, %p52
      %p54 = scmp.ne.s32.totalorder %s43, %s46
      %p55 = scmp.eq.s32.totalorder %s17, 1
      %p56 = por %p54, %p55
      %p57 = scmp.ne.s32.totalorder %s46, %s47
      %p58 = scmp.eq.s32.totalorder %s17, 0
      %p59 = por %p57, %p58
      %p60 = scmp.ne.s32.totalorder %s46, %s47
      %p61 = scmp.eq.s32.totalorder %s18, 1
      %p62 = por %p60, %p61
      %p64 = scmp.ne.s32.totalorder %s47, %s63
      %p65 = scmp.eq.s32.totalorder %s18, 0
      %p66 = por %p64, %p65
      %s67 = ssub.s32 %s19, %s38
      %s68 = ssub.s32 %s20, %s34
      %s69 = sor.u32 %s67, %s68
      %p70 = scmp.eq.s32.totalorder %s69, 0
      %s72 = sadd.s32 %s71, 1
      %s73 = scalar_select %p70, %s71, %s72
      %p76 = pneg %p70
      %p77 = scmp.eq.s32.totalorder %s12, 1
      %p78 = por %p76, %p77
      %p79 = scmp.ne.s32.totalorder %s71, %s74
      %p80 = scmp.eq.s32.totalorder %s12, 0
      %p81 = por %p79, %p80
      %p82 = scmp.ne.s32.totalorder %s71, %s74
      %p83 = scmp.eq.s32.totalorder %s17, 1
      %p84 = por %p82, %p83
      %p85 = scmp.ne.s32.totalorder %s74, %s75
      %p86 = scmp.eq.s32.totalorder %s17, 0
      %p87 = por %p85, %p86
      %p88 = scmp.ne.s32.totalorder %s74, %s75
      %p89 = scmp.eq.s32.totalorder %s18, 1
      %p90 = por %p88, %p89
      %p92 = scmp.ne.s32.totalorder %s75, %s91
      %p93 = scmp.eq.s32.totalorder %s18, 0
      %p94 = por %p92, %p93
      %s95 = ssub.s32 %s19, %s38
      %s96 = ssub.s32 %s20, %s34
      %s97 = sor.u32 %s95, %s96
      %p98 = scmp.eq.s32.totalorder %s97, 0
      %s100 = sadd.s32 %s99, 1
      %s101 = scalar_select %p98, %s99, %s100
      %p104 = pneg %p98
      %p105 = scmp.eq.s32.totalorder %s12, 1
      %p106 = por %p104, %p105
      %p107 = scmp.ne.s32.totalorder %s99, %s102
      %p108 = scmp.eq.s32.totalorder %s12, 0
      %p109 = por %p107, %p108
      %p110 = scmp.ne.s32.totalorder %s99, %s102
      %p111 = scmp.eq.s32.totalorder %s17, 1
      %p112 = por %p110, %p111
      %p113 = scmp.ne.s32.totalorder %s102, %s103
      %p114 = scmp.eq.s32.totalorder %s17, 0
      %p115 = por %p113, %p114
      %p116 = scmp.ne.s32.totalorder %s102, %s103
      %p117 = scmp.eq.s32.totalorder %s18, 1
      %p118 = por %p116, %p117
      %p120 = scmp.ne.s32.totalorder %s103, %s119
      %p121 = scmp.eq.s32.totalorder %s18, 0
      %p122 = por %p120, %p121
      %s123 = ssub.s32 %s21, %s30
      %s124 = ssub.s32 %s19, %s38
      %s125 = sor.u32 %s123, %s124
      %s126 = ssub.s32 %s20, %s34
      %s127 = sor.u32 %s125, %s126
      %p128 = scmp.eq.s32.totalorder %s127, 0
      %s130 = sadd.s32 %s129, 1
      %s131 = scalar_select %p128, %s129, %s130
      %p134 = pneg %p128
      %p135 = scmp.eq.s32.totalorder %s12, 1
      %p136 = por %p134, %p135
      %p137 = scmp.ne.s32.totalorder %s129, %s132
      %p138 = scmp.eq.s32.totalorder %s12, 0
      %p139 = por %p137, %p138
      %p140 = scmp.ne.s32.totalorder %s129, %s132
      %p141 = scmp.eq.s32.totalorder %s17, 1
      %p142 = por %p140, %p141
      %p143 = scmp.ne.s32.totalorder %s132, %s133
      %p144 = scmp.eq.s32.totalorder %s17, 0
      %p145 = por %p143, %p144
      %p146 = scmp.ne.s32.totalorder %s132, %s133
      %p147 = scmp.eq.s32.totalorder %s18, 1
      %p148 = por %p146, %p147
      %p150 = scmp.ne.s32.totalorder %s133, %s149
      %p151 = scmp.eq.s32.totalorder %s18, 0
      %p152 = por %p150, %p151
      %p153 = scmp.le.s32.totalorder 1, %s12
      %p154 = scmp.lt.s32.totalorder %s12, 3
      %p155 = pnand %p153, %p154
      %p156 = pneg %p155
      // Predicated region
      $region9: #{tpu_custom_call.1} parent=5 // pred_check
        _
      $region10: #{tpu_custom_call.1} parent=5 // pred_check_branch
        %158 = sbr.rel (%p155) target = $region12
      $region11: #{tpu_custom_call.1} parent=5 // pred_region
        %s159 = ssub.s32 %s12, 1
        // Predicated region
        $region13: #{tpu_custom_call.1} parent=11 // pred_check
          %p160 = pneg %p87
        $region14: #{tpu_custom_call.1} parent=11 // pred_check_branch
          %162 = sbr.rel (%p160) target = $region16
        $region15: #{tpu_custom_call.1} parent=11 // pred_region
          %s163 = smul.u32 8, %s22
          %s164 = smul.u32 2, %s23
          %p165 = scmp.lt.s32.totalorder %s163, 7
          %s166 = scalar_select %p165, %s163, 7
          %p167 = scmp.lt.s32.totalorder %s164, 1
          %s168 = scalar_select %p167, %s164, 1
          %s169 = smul.addr %s166, 10
          %s170 = sadd.s32 %s168, %s169
          %s171 = smul.addr %s170, 8
          %s172 = scalar_lea.vmem %s1, %s171
          %s173 = smul.u32 8, %s22
          %s174 = smul.u32 2, %s23
        $region16: #{tpu_custom_call.1} parent=11 // pred_fallthru
          _
        // Predicated region
        $region17: #{tpu_custom_call.1} parent=11 // pred_check
          %p175 = pneg %p115
        $region18: #{tpu_custom_call.1} parent=11 // pred_check_branch
          %177 = sbr.rel (%p175) target = $region20
        $region19: #{tpu_custom_call.1} parent=11 // pred_region
          %s178 = smul.u32 2, %s23
          %p179 = scmp.lt.s32.totalorder %s22, 0
          %s180 = scalar_select %p179, %s22, 0
          %p181 = scmp.lt.s32.totalorder %s178, 1
          %s182 = scalar_select %p181, %s178, 1
          %s183 = smul.addr %s180, 2
          %s184 = sadd.s32 %s182, %s183
          %s185 = smul.addr %s184, 8
          %s186 = scalar_lea.vmem %s2, %s185
          %s187 = smul.u32 2, %s23
        $region20: #{tpu_custom_call.1} parent=11 // pred_fallthru
          _
      $region12: #{tpu_custom_call.1} parent=5 // pred_fallthru
        _
      %p188 = scmp.lt.s32.totalorder %s12, 2
      // Predicated region
      $region21: #{tpu_custom_call.1} parent=5 // pred_check
        %p189 = pneg %p188
      $region22: #{tpu_custom_call.1} parent=5 // pred_check_branch
        %191 = sbr.rel (%p189) target = $region24
      $region23: #{tpu_custom_call.1} parent=5 // pred_region
        // Predicated region
        $region25: #{tpu_custom_call.1} parent=23 // pred_check
          %p192 = pneg %p53
        $region26: #{tpu_custom_call.1} parent=23 // pred_check_branch
          %194 = sbr.rel (%p192) target = $region28
        $region27: #{tpu_custom_call.1} parent=23 // pred_region
          %s195 = smul.u32 2, %s20
          %p196 = scmp.lt.s32.totalorder %s21, 1
          %s197 = scalar_select %p196, %s21, 1
          %p198 = scmp.lt.s32.totalorder %s195, 1
          %s199 = scalar_select %p198, %s195, 1
          %s200 = smul.addr %s197, 10
          %s201 = sadd.s32 %s199, %s200
          %s202 = smul.addr %s201, 8
          %s203 = scalar_lea.vmem %s0, %s202
          %s204 = smul.u32 2, %s20
        $region28: #{tpu_custom_call.1} parent=23 // pred_fallthru
          _
      $region24: #{tpu_custom_call.1} parent=5 // pred_fallthru
        _
      %p205 = scmp.le.s32.totalorder 1, %s12
      %p206 = scmp.lt.s32.totalorder %s12, 3
      %p207 = pnand %p205, %p206
      %p208 = pneg %p207
      // Predicated region
      $region29: #{tpu_custom_call.1} parent=5 // pred_check
        _
      $region30: #{tpu_custom_call.1} parent=5 // pred_check_branch
        %210 = sbr.rel (%p207) target = $region32
      $region31: #{tpu_custom_call.1} parent=5 // pred_region
        %s211 = ssub.s32 %s12, 1
        %s212 = smul.u32 2, %s23
        %p213 = scmp.lt.s32.totalorder %s24, 1
        %s214 = scalar_select %p213, %s24, 1
        %p215 = scmp.lt.s32.totalorder %s212, 1
        %s216 = scalar_select %p215, %s212, 1
        %s217 = smul.addr %s214, 10
        %s218 = sadd.s32 %s216, %s217
        %s219 = smul.addr %s218, 8
        %s220 = scalar_lea.vmem %s0, %s219
        %p221 = pneg %p59
        %p222 = pneg %p56
        %s223 = smul.u32 8, %s22
        %s224 = smul.u32 2, %s23
        %p225 = scmp.lt.s32.totalorder %s223, 7
        %s226 = scalar_select %p225, %s223, 7
        %p227 = scmp.lt.s32.totalorder %s224, 1
        %s228 = scalar_select %p227, %s224, 1
        %s229 = smul.addr %s226, 10
        %s230 = sadd.s32 %s228, %s229
        %s231 = smul.addr %s230, 8
        %s232 = scalar_lea.vmem %s1, %s231
        %p233 = pneg %p87
        %p234 = pneg %p84
        %s235 = smul.u32 2, %s23
        %p236 = scmp.lt.s32.totalorder %s22, 0
        %s237 = scalar_select %p236, %s22, 0
        %p238 = scmp.lt.s32.totalorder %s235, 1
        %s239 = scalar_select %p238, %s235, 1
        %s240 = smul.addr %s237, 2
        %s241 = sadd.s32 %s239, %s240
        %s242 = smul.addr %s241, 8
        %s243 = scalar_lea.vmem %s2, %s242
        %p244 = pneg %p115
        %p245 = pneg %p112
        %p246 = pneg %p145
        %p247 = pneg %p142
        %s248 = sand.u32 %s132, 1
        %s249 = scalar_lea.sflag [#allocation3], %s248
        %s250 = sand.u32 %s132, 1
        %s251 = smul.addr %s250, 16
        %s252 = scalar_lea.vmem [#allocation2], %s251
        %s253 = smul.u32 2, %s23
        %p254 = scmp.lt.s32.totalorder %s24, 1
        %s255 = scalar_select %p254, %s24, 1
        %p256 = scmp.lt.s32.totalorder %s253, 1
        %s257 = scalar_select %p256, %s253, 1
        %s258 = smul.addr %s255, 10
        %s259 = sadd.s32 %s257, %s258
        %s260 = smul.addr %s259, 8
        %s261 = scalar_lea.vmem %s0, %s260
        %s262 = smul.u32 2, %s23
        %s263 = smul.u32 8, %s22
        %s264 = smul.u32 2, %s23
        %p265 = scmp.lt.s32.totalorder %s263, 7
        %s266 = scalar_select %p265, %s263, 7
        %p267 = scmp.lt.s32.totalorder %s264, 1
        %s268 = scalar_select %p267, %s264, 1
        %s269 = smul.addr %s266, 10
        %s270 = sadd.s32 %s268, %s269
        %s271 = smul.addr %s270, 8
        %s272 = scalar_lea.vmem %s1, %s271
        %s273 = smul.u32 8, %s22
        %s274 = smul.u32 2, %s23
        %s275 = smul.u32 2, %s23
        %p276 = scmp.lt.s32.totalorder %s22, 0
        %s277 = scalar_select %p276, %s22, 0
        %p278 = scmp.lt.s32.totalorder %s275, 1
        %s279 = scalar_select %p278, %s275, 1
        %s280 = smul.addr %s277, 2
        %s281 = sadd.s32 %s279, %s280
        %s282 = smul.addr %s281, 8
        %s283 = scalar_lea.vmem %s2, %s282
        %s284 = smul.u32 2, %s23
        %s285 = smul.u32 2, %s23
        %v286 = vld [vmem:[%s261] sm:$0xff]
        %v287 = vld [vmem:[%s261 + $0x8] sm:$0xff]
        %v288 = vld [vmem:[%s261 + $0x10] sm:$0xff]
        %v289 = vld [vmem:[%s261 + $0x18] sm:$0xff]
        %v290 = vld [vmem:[%s261 + $0x20] sm:$0xff]
        %v291 = vld [vmem:[%s261 + $0x28] sm:$0xff]
        %v292 = vld [vmem:[%s261 + $0x30] sm:$0xff]
        %v293 = vld [vmem:[%s261 + $0x38] sm:$0xff]
        %v294 = vld [vmem:[%s261 + $0x40] sm:$0xf]
        %v295 = vld [vmem:[%s261 + $0x48] sm:$0xf]
        %v296 = vld [vmem:[%s272] sm:$0xff]
        %v297 = vld [vmem:[%s272 + $0x8] sm:$0xff]
        %v298 = vld [vmem:[%s272 + $0x10] sm:$0xff]
        %v299 = vld [vmem:[%s272 + $0x18] sm:$0xff]
        %v300 = vld [vmem:[%s272 + $0x20] sm:$0xff]
        %v301 = vld [vmem:[%s272 + $0x28] sm:$0xff]
        %v302 = vld [vmem:[%s272 + $0x30] sm:$0xff]
        %v303 = vld [vmem:[%s272 + $0x38] sm:$0xff]
        %v304 = vld [vmem:[%s272 + $0x40] sm:$0xf]
        %v305 = vld [vmem:[%s272 + $0x48] sm:$0xf]
        %v306 = vld [vmem:[%s272 + $0x50] sm:$0xff]
        %v307 = vld [vmem:[%s272 + $0x58] sm:$0xff]
        %v308 = vld [vmem:[%s272 + $0x60] sm:$0xff]
        %v309 = vld [vmem:[%s272 + $0x68] sm:$0xff]
        %v310 = vld [vmem:[%s272 + $0x70] sm:$0xff]
        %v311 = vld [vmem:[%s272 + $0x78] sm:$0xff]
        %v312 = vld [vmem:[%s272 + $0x80] sm:$0xff]
        %v313 = vld [vmem:[%s272 + $0x88] sm:$0xff]
        %v314 = vld [vmem:[%s272 + $0x90] sm:$0xf]
        %v315 = vld [vmem:[%s272 + $0x98] sm:$0xf]
        %v316 = vld [vmem:[%s272 + $0xa0] sm:$0xff]
        %v317 = vld [vmem:[%s272 + $0xa8] sm:$0xff]
        %v318 = vld [vmem:[%s272 + $0xb0] sm:$0xff]
        %v319 = vld [vmem:[%s272 + $0xb8] sm:$0xff]
        %v320 = vld [vmem:[%s272 + $0xc0] sm:$0xff]
        %v321 = vld [vmem:[%s272 + $0xc8] sm:$0xff]
        %v322 = vld [vmem:[%s272 + $0xd0] sm:$0xff]
        %v323 = vld [vmem:[%s272 + $0xd8] sm:$0xff]
        %v324 = vld [vmem:[%s272 + $0xe0] sm:$0xf]
        %v325 = vld [vmem:[%s272 + $0xe8] sm:$0xf]
        %v326 = vld [vmem:[%s272 + $0xf0] sm:$0xff]
        %v327 = vld [vmem:[%s272 + $0xf8] sm:$0xff]
        %v328 = vld [vmem:[%s272 + $0x100] sm:$0xff]
        %v329 = vld [vmem:[%s272 + $0x108] sm:$0xff]
        %v330 = vld [vmem:[%s272 + $0x110] sm:$0xff]
        %v331 = vld [vmem:[%s272 + $0x118] sm:$0xff]
        %v332 = vld [vmem:[%s272 + $0x120] sm:$0xff]
        %v333 = vld [vmem:[%s272 + $0x128] sm:$0xff]
        %v334 = vld [vmem:[%s272 + $0x130] sm:$0xf]
        %v335 = vld [vmem:[%s272 + $0x138] sm:$0xf]
        %v336 = vld [vmem:[%s272 + $0x140] sm:$0xff]
        %v337 = vld [vmem:[%s272 + $0x148] sm:$0xff]
        %v338 = vld [vmem:[%s272 + $0x150] sm:$0xff]
        %v339 = vld [vmem:[%s272 + $0x158] sm:$0xff]
        %v340 = vld [vmem:[%s272 + $0x160] sm:$0xff]
        %v341 = vld [vmem:[%s272 + $0x168] sm:$0xff]
        %v342 = vld [vmem:[%s272 + $0x170] sm:$0xff]
        %v343 = vld [vmem:[%s272 + $0x178] sm:$0xff]
        %v344 = vld [vmem:[%s272 + $0x180] sm:$0xf]
        %v345 = vld [vmem:[%s272 + $0x188] sm:$0xf]
        %v346 = vld [vmem:[%s272 + $0x190] sm:$0xff]
        %v347 = vld [vmem:[%s272 + $0x198] sm:$0xff]
        %v348 = vld [vmem:[%s272 + $0x1a0] sm:$0xff]
        %v349 = vld [vmem:[%s272 + $0x1a8] sm:$0xff]
        %v350 = vld [vmem:[%s272 + $0x1b0] sm:$0xff]
        %v351 = vld [vmem:[%s272 + $0x1b8] sm:$0xff]
        %v352 = vld [vmem:[%s272 + $0x1c0] sm:$0xff]
        %v353 = vld [vmem:[%s272 + $0x1c8] sm:$0xff]
        %v354 = vld [vmem:[%s272 + $0x1d0] sm:$0xf]
        %v355 = vld [vmem:[%s272 + $0x1d8] sm:$0xf]
        %v356 = vld [vmem:[%s272 + $0x1e0] sm:$0xff]
        %v357 = vld [vmem:[%s272 + $0x1e8] sm:$0xff]
        %v358 = vld [vmem:[%s272 + $0x1f0] sm:$0xff]
        %v359 = vld [vmem:[%s272 + $0x1f8] sm:$0xff]
        %v360 = vld [vmem:[%s272 + $0x200] sm:$0xff]
        %v361 = vld [vmem:[%s272 + $0x208] sm:$0xff]
        %v362 = vld [vmem:[%s272 + $0x210] sm:$0xff]
        %v363 = vld [vmem:[%s272 + $0x218] sm:$0xff]
        %v364 = vld [vmem:[%s272 + $0x220] sm:$0xf]
        %v365 = vld [vmem:[%s272 + $0x228] sm:$0xf]
        %v366 = vld [vmem:[%s272 + $0x230] sm:$0xff]
        %v367 = vld [vmem:[%s272 + $0x238] sm:$0xff]
        %v368 = vld [vmem:[%s272 + $0x240] sm:$0xff]
        %v369 = vld [vmem:[%s272 + $0x248] sm:$0xff]
        %v370 = vld [vmem:[%s272 + $0x250] sm:$0xff]
        %v371 = vld [vmem:[%s272 + $0x258] sm:$0xff]
        %v372 = vld [vmem:[%s272 + $0x260] sm:$0xff]
        %v373 = vld [vmem:[%s272 + $0x268] sm:$0xff]
        %v374 = vld [vmem:[%s272 + $0x270] sm:$0xf]
        %v375 = vld [vmem:[%s272 + $0x278] sm:$0xf]
        %v376 = vmul.f32 %v296, %v286
        %v377 = vmul.f32 %v297, %v287
        %v378 = vmul.f32 %v298, %v288
        %v379 = vmul.f32 %v299, %v289
        %v380 = vmul.f32 %v300, %v290
        %v381 = vmul.f32 %v301, %v291
        %v382 = vmul.f32 %v302, %v292
        %v383 = vmul.f32 %v303, %v293
        %v384 = vmul.f32 %v304, %v294
        %v385 = vmul.f32 %v305, %v295
        %v386 = vmul.f32 %v306, %v286
        %v387 = vmul.f32 %v307, %v287
        %v388 = vmul.f32 %v308, %v288
        %v389 = vmul.f32 %v309, %v289
        %v390 = vmul.f32 %v310, %v290
        %v391 = vmul.f32 %v311, %v291
        %v392 = vmul.f32 %v312, %v292
        %v393 = vmul.f32 %v313, %v293
        %v394 = vmul.f32 %v314, %v294
        %v395 = vmul.f32 %v315, %v295
        %v396 = vmul.f32 %v316, %v286
        %v397 = vmul.f32 %v317, %v287
        %v398 = vmul.f32 %v318, %v288
        %v399 = vmul.f32 %v319, %v289
        %v400 = vmul.f32 %v320, %v290
        %v401 = vmul.f32 %v321, %v291
        %v402 = vmul.f32 %v322, %v292
        %v403 = vmul.f32 %v323, %v293
        %v404 = vmul.f32 %v324, %v294
        %v405 = vmul.f32 %v325, %v295
        %v406 = vmul.f32 %v326, %v286
        %v407 = vmul.f32 %v327, %v287
        %v408 = vmul.f32 %v328, %v288
        %v409 = vmul.f32 %v329, %v289
        %v410 = vmul.f32 %v330, %v290
        %v411 = vmul.f32 %v331, %v291
        %v412 = vmul.f32 %v332, %v292
        %v413 = vmul.f32 %v333, %v293
        %v414 = vmul.f32 %v334, %v294
        %v415 = vmul.f32 %v335, %v295
        %v416 = vmul.f32 %v336, %v286
        %v417 = vmul.f32 %v337, %v287
        %v418 = vmul.f32 %v338, %v288
        %v419 = vmul.f32 %v339, %v289
        %v420 = vmul.f32 %v340, %v290
        %v421 = vmul.f32 %v341, %v291
        %v422 = vmul.f32 %v342, %v292
        %v423 = vmul.f32 %v343, %v293
        %v424 = vmul.f32 %v344, %v294
        %v425 = vmul.f32 %v345, %v295
        %v426 = vmul.f32 %v346, %v286
        %v427 = vmul.f32 %v347, %v287
        %v428 = vmul.f32 %v348, %v288
        %v429 = vmul.f32 %v349, %v289
        %v430 = vmul.f32 %v350, %v290
        %v431 = vmul.f32 %v351, %v291
        %v432 = vmul.f32 %v352, %v292
        %v433 = vmul.f32 %v353, %v293
        %v434 = vmul.f32 %v354, %v294
        %v435 = vmul.f32 %v355, %v295
        %v436 = vmul.f32 %v356, %v286
        %v437 = vmul.f32 %v357, %v287
        %v438 = vmul.f32 %v358, %v288
        %v439 = vmul.f32 %v359, %v289
        %v440 = vmul.f32 %v360, %v290
        %v441 = vmul.f32 %v361, %v291
        %v442 = vmul.f32 %v362, %v292
        %v443 = vmul.f32 %v363, %v293
        %v444 = vmul.f32 %v364, %v294
        %v445 = vmul.f32 %v365, %v295
        %v446 = vmul.f32 %v366, %v286
        %v447 = vmul.f32 %v367, %v287
        %v448 = vmul.f32 %v368, %v288
        %v449 = vmul.f32 %v369, %v289
        %v450 = vmul.f32 %v370, %v290
        %v451 = vmul.f32 %v371, %v291
        %v452 = vmul.f32 %v372, %v292
        %v453 = vmul.f32 %v373, %v293
        %v454 = vmul.f32 %v374, %v294
        %v455 = vmul.f32 %v375, %v295
        %v456 = vadd.f32 %v376, %v378
        %v457 = vadd.f32 %v456, %v380
        %v458 = vadd.f32 %v457, %v382
        %vm459 = vcmask 1043456
        %v460 = vsel %vm459, %v384, 0.0
        %v461 = vadd.f32 %v458, %v460
        %v462 = vrot.slane %v461, 4
        %v463 = vadd.f32 %v461, %v462
        %v464 = vrot.slane %v463, 2
        %v465 = vadd.f32 %v463, %v464
        %v466 = vrot.slane %v465, 1
        %v467 = vadd.f32 %v465, %v466
        %v468 = vadd.f32 %v377, %v379
        %v469 = vadd.f32 %v468, %v381
        %v470 = vadd.f32 %v469, %v383
        %v471 = vsel %vm459, %v385, 0.0
        %v472 = vadd.f32 %v470, %v471
        %v473 = vrot.slane %v472, 4
        %v474 = vadd.f32 %v472, %v473
        %v475 = vrot.slane %v474, 2
        %v476 = vadd.f32 %v474, %v475
        %v477 = vrot.slane %v476, 1
        %v478 = vadd.f32 %v476, %v477
        %v479 = vadd.f32 %v386, %v388
        %v480 = vadd.f32 %v479, %v390
        %v481 = vadd.f32 %v480, %v392
        %v482 = vsel %vm459, %v394, 0.0
        %v483 = vadd.f32 %v481, %v482
        %v484 = vrot.slane %v483, 4
        %v485 = vadd.f32 %v483, %v484
        %v486 = vrot.slane %v485, 2
        %v487 = vadd.f32 %v485, %v486
        %v488 = vrot.slane %v487, 1
        %v489 = vadd.f32 %v487, %v488
        %v490 = vadd.f32 %v387, %v389
        %v491 = vadd.f32 %v490, %v391
        %v492 = vadd.f32 %v491, %v393
        %v493 = vsel %vm459, %v395, 0.0
        %v494 = vadd.f32 %v492, %v493
        %v495 = vrot.slane %v494, 4
        %v496 = vadd.f32 %v494, %v495
        %v497 = vrot.slane %v496, 2
        %v498 = vadd.f32 %v496, %v497
        %v499 = vrot.slane %v498, 1
        %v500 = vadd.f32 %v498, %v499
        %v501 = vadd.f32 %v396, %v398
        %v502 = vadd.f32 %v501, %v400
        %v503 = vadd.f32 %v502, %v402
        %v504 = vsel %vm459, %v404, 0.0
        %v505 = vadd.f32 %v503, %v504
        %v506 = vrot.slane %v505, 4
        %v507 = vadd.f32 %v505, %v506
        %v508 = vrot.slane %v507, 2
        %v509 = vadd.f32 %v507, %v508
        %v510 = vrot.slane %v509, 1
        %v511 = vadd.f32 %v509, %v510
        %v512 = vadd.f32 %v397, %v399
        %v513 = vadd.f32 %v512, %v401
        %v514 = vadd.f32 %v513, %v403
        %v515 = vsel %vm459, %v405, 0.0
        %v516 = vadd.f32 %v514, %v515
        %v517 = vrot.slane %v516, 4
        %v518 = vadd.f32 %v516, %v517
        %v519 = vrot.slane %v518, 2
        %v520 = vadd.f32 %v518, %v519
        %v521 = vrot.slane %v520, 1
        %v522 = vadd.f32 %v520, %v521
        %v523 = vadd.f32 %v406, %v408
        %v524 = vadd.f32 %v523, %v410
        %v525 = vadd.f32 %v524, %v412
        %v526 = vsel %vm459, %v414, 0.0
        %v527 = vadd.f32 %v525, %v526
        %v528 = vrot.slane %v527, 4
        %v529 = vadd.f32 %v527, %v528
        %v530 = vrot.slane %v529, 2
        %v531 = vadd.f32 %v529, %v530
        %v532 = vrot.slane %v531, 1
        %v533 = vadd.f32 %v531, %v532
        %v534 = vadd.f32 %v407, %v409
        %v535 = vadd.f32 %v534, %v411
        %v536 = vadd.f32 %v535, %v413
        %v537 = vsel %vm459, %v415, 0.0
        %v538 = vadd.f32 %v536, %v537
        %v539 = vrot.slane %v538, 4
        %v540 = vadd.f32 %v538, %v539
        %v541 = vrot.slane %v540, 2
        %v542 = vadd.f32 %v540, %v541
        %v543 = vrot.slane %v542, 1
        %v544 = vadd.f32 %v542, %v543
        %v545 = vadd.f32 %v416, %v418
        %v546 = vadd.f32 %v545, %v420
        %v547 = vadd.f32 %v546, %v422
        %v548 = vsel %vm459, %v424, 0.0
        %v549 = vadd.f32 %v547, %v548
        %v550 = vrot.slane %v549, 4
        %v551 = vadd.f32 %v549, %v550
        %v552 = vrot.slane %v551, 2
        %v553 = vadd.f32 %v551, %v552
        %v554 = vrot.slane %v553, 1
        %v555 = vadd.f32 %v553, %v554
        %v556 = vadd.f32 %v417, %v419
        %v557 = vadd.f32 %v556, %v421
        %v558 = vadd.f32 %v557, %v423
        %v559 = vsel %vm459, %v425, 0.0
        %v560 = vadd.f32 %v558, %v559
        %v561 = vrot.slane %v560, 4
        %v562 = vadd.f32 %v560, %v561
        %v563 = vrot.slane %v562, 2
        %v564 = vadd.f32 %v562, %v563
        %v565 = vrot.slane %v564, 1
        %v566 = vadd.f32 %v564, %v565
        %v567 = vadd.f32 %v426, %v428
        %v568 = vadd.f32 %v567, %v430
        %v569 = vadd.f32 %v568, %v432
        %v570 = vsel %vm459, %v434, 0.0
        %v571 = vadd.f32 %v569, %v570
        %v572 = vrot.slane %v571, 4
        %v573 = vadd.f32 %v571, %v572
        %v574 = vrot.slane %v573, 2
        %v575 = vadd.f32 %v573, %v574
        %v576 = vrot.slane %v575, 1
        %v577 = vadd.f32 %v575, %v576
        %v578 = vadd.f32 %v427, %v429
        %v579 = vadd.f32 %v578, %v431
        %v580 = vadd.f32 %v579, %v433
        %v581 = vsel %vm459, %v435, 0.0
        %v582 = vadd.f32 %v580, %v581
        %v583 = vrot.slane %v582, 4
        %v584 = vadd.f32 %v582, %v583
        %v585 = vrot.slane %v584, 2
        %v586 = vadd.f32 %v584, %v585
        %v587 = vrot.slane %v586, 1
        %v588 = vadd.f32 %v586, %v587
        %v589 = vadd.f32 %v436, %v438
        %v590 = vadd.f32 %v589, %v440
        %v591 = vadd.f32 %v590, %v442
        %v592 = vsel %vm459, %v444, 0.0
        %v593 = vadd.f32 %v591, %v592
        %v594 = vrot.slane %v593, 4
        %v595 = vadd.f32 %v593, %v594
        %v596 = vrot.slane %v595, 2
        %v597 = vadd.f32 %v595, %v596
        %v598 = vrot.slane %v597, 1
        %v599 = vadd.f32 %v597, %v598
        %v600 = vadd.f32 %v437, %v439
        %v601 = vadd.f32 %v600, %v441
        %v602 = vadd.f32 %v601, %v443
        %v603 = vsel %vm459, %v445, 0.0
        %v604 = vadd.f32 %v602, %v603
        %v605 = vrot.slane %v604, 4
        %v606 = vadd.f32 %v604, %v605
        %v607 = vrot.slane %v606, 2
        %v608 = vadd.f32 %v606, %v607
        %v609 = vrot.slane %v608, 1
        %v610 = vadd.f32 %v608, %v609
        %v611 = vadd.f32 %v446, %v448
        %v612 = vadd.f32 %v611, %v450
        %v613 = vadd.f32 %v612, %v452
        %v614 = vsel %vm459, %v454, 0.0
        %v615 = vadd.f32 %v613, %v614
        %v616 = vrot.slane %v615, 4
        %v617 = vadd.f32 %v615, %v616
        %v618 = vrot.slane %v617, 2
        %v619 = vadd.f32 %v617, %v618
        %v620 = vrot.slane %v619, 1
        %v621 = vadd.f32 %v619, %v620
        %v622 = vadd.f32 %v447, %v449
        %v623 = vadd.f32 %v622, %v451
        %v624 = vadd.f32 %v623, %v453
        %v625 = vsel %vm459, %v455, 0.0
        %v626 = vadd.f32 %v624, %v625
        %v627 = vrot.slane %v626, 4
        %v628 = vadd.f32 %v626, %v627
        %v629 = vrot.slane %v628, 2
        %v630 = vadd.f32 %v628, %v629
        %v631 = vrot.slane %v630, 1
        %v632 = vadd.f32 %v630, %v631
        %v633 = vld [vmem:[%s283] sm:$0xff]
        %v634 = vld [vmem:[%s283 + $0x8] sm:$0xff]
        %v637 = vrot.slane %v633, 1
        %v638 = vrot.slane %v634, 1
        %v639 = vrot.slane %v633, 2
        %v640 = vrot.slane %v634, 2
        %v641 = vrot.slane %v633, 3
        %v642 = vrot.slane %v634, 3
        %v643 = vrot.slane %v633, 4
        %v644 = vrot.slane %v634, 4
        %v645 = vrot.slane %v633, 5
        %v646 = vrot.slane %v634, 5
        %v647 = vrot.slane %v633, 6
        %v648 = vrot.slane %v634, 6
        %v649 = vrot.slane %v633, 7
        %v650 = vrot.slane %v634, 7
        %v667 = vadd.f32 %v467, %v633
        %v668 = vadd.f32 %v478, %v634
        %v669 = vadd.f32 %v489, %v637
        %v670 = vadd.f32 %v500, %v638
        %v671 = vadd.f32 %v511, %v639
        %v672 = vadd.f32 %v522, %v640
        %v673 = vadd.f32 %v533, %v641
        %v674 = vadd.f32 %v544, %v642
        %v675 = vadd.f32 %v555, %v643
        %v676 = vadd.f32 %v566, %v644
        %v677 = vadd.f32 %v577, %v645
        %v678 = vadd.f32 %v588, %v646
        %v679 = vadd.f32 %v599, %v647
        %v680 = vadd.f32 %v610, %v648
        %v681 = vadd.f32 %v621, %v649
        %v682 = vadd.f32 %v632, %v650
        %v699 = vrot.slane %v669, 7
        %vm700 = vcmask 1041409
        %v701 = vsel %vm700, %v699, %v667
        %v702 = vrot.slane %v671, 6
        %vm703 = vcmask 1042434
        %v704 = vsel %vm703, %v702, %v701
        %v705 = vrot.slane %v673, 5
        %vm706 = vcmask 1043459
        %v707 = vsel %vm706, %v705, %v704
        %v708 = vrot.slane %v675, 4
        %vm709 = vcmask 1044484
        %v710 = vsel %vm709, %v708, %v707
        %v711 = vrot.slane %v677, 3
        %vm712 = vcmask 1045509
        %v713 = vsel %vm712, %v711, %v710
        %v714 = vrot.slane %v679, 2
        %vm715 = vcmask 1046534
        %v716 = vsel %vm715, %v714, %v713
        %v717 = vrot.slane %v681, 1
        %vm718 = vcmask 1047559
        %v719 = vsel %vm718, %v717, %v716
        %v720 = vrot.slane %v670, 7
        %v721 = vsel %vm700, %v720, %v668
        %v722 = vrot.slane %v672, 6
        %v723 = vsel %vm703, %v722, %v721
        %v724 = vrot.slane %v674, 5
        %v725 = vsel %vm706, %v724, %v723
        %v726 = vrot.slane %v676, 4
        %v727 = vsel %vm709, %v726, %v725
        %v728 = vrot.slane %v678, 3
        %v729 = vsel %vm712, %v728, %v727
        %v730 = vrot.slane %v680, 2
        %v731 = vsel %vm715, %v730, %v729
        %v732 = vrot.slane %v682, 1
        %v733 = vsel %vm718, %v732, %v731
        %736 = vst [vmem:[%s252] sm:$0xff] %v719
        %737 = vst [vmem:[%s252 + $0x8] sm:$0xff] %v733
        %s738 = sand.u32 %s132, 1
        %s739 = scalar_lea.sflag [#allocation3], %s738
        %s740 = sand.u32 %s132, 1
        %s741 = smul.addr %s740, 16
        %s742 = scalar_lea.vmem [#allocation2], %s741
        // Predicated region
        $region33: #{tpu_custom_call.1} parent=31 // pred_check
          %p743 = pneg %p142
        $region34: #{tpu_custom_call.1} parent=31 // pred_check_branch
          %745 = sbr.rel (%p743) target = $region36
        $region35: #{tpu_custom_call.1} parent=31 // pred_region
          %s746 = smul.u32 2, %s23
          %748 = vsyncadd %s739, 0
          %s749 = smul.addr %s22, 2
          %s750 = sadd.s32 %s746, %s749
          %s751 = smul.addr %s24, 2
          %s752 = sadd.s32 %s750, %s751
          %s753 = smul.addr %s752, 8
          %s754 = scalar_lea.hbm %s3, %s753
          %s756 = sshll.u32 %s742, 4
          %s757 = int_to_ptr.vmem [resolvable:$true] %s756
          %s758 = sshll.u32 %s754, 4
          %s759 = int_to_ptr.hbm [resolvable:$true] %s758
          %761 = dma.vmem_to_hbm [thread:$0]  %s757, 256, %s759, %s739
        $region36: #{tpu_custom_call.1} parent=31 // pred_fallthru
          _
      $region32: #{tpu_custom_call.1} parent=5 // pred_fallthru
        _
      %p762 = scmp.le.s32.totalorder 2, %s12
      // Predicated region
      $region37: #{tpu_custom_call.1} parent=5 // pred_check
        %p763 = pneg %p762
      $region38: #{tpu_custom_call.1} parent=5 // pred_check_branch
        %765 = sbr.rel (%p763) target = $region40
      $region39: #{tpu_custom_call.1} parent=5 // pred_region
        %s766 = ssub.s32 %s12, 2
        // Predicated region
        $region41: #{tpu_custom_call.1} parent=39 // pred_check
          %p767 = pneg %p148
        $region42: #{tpu_custom_call.1} parent=39 // pred_check_branch
          %769 = sbr.rel (%p767) target = $region44
        $region43: #{tpu_custom_call.1} parent=39 // pred_region
          %s770 = sand.u32 %s133, 1
          %s771 = scalar_lea.sflag [#allocation3], %s770
          %s772 = sand.u32 %s133, 1
          %s773 = smul.addr %s772, 16
          %s774 = scalar_lea.vmem [#allocation2], %s773
          %776 = dma.done %s771, 256
        $region44: #{tpu_custom_call.1} parent=39 // pred_fallthru
          _
      $region40: #{tpu_custom_call.1} parent=5 // pred_fallthru
        _
    $region6: #{tpu_custom_call.1} parent=1 // loop_footer
      %s16 = sadd.s32 1, %s12
    $region7: #{tpu_custom_call.1} parent=1 // loop_footer_branch
      %11 = sbr.rel target = $region3
    $region8: #{tpu_custom_call.1} parent=1 // loop_exit
      _
    %777 = vsyncpa [#allocation3], 1
    %s778 = scalar_lea.sflag [#allocation3], 1
    %779 = vsyncpa %s778, 1

</llo_original>
